<compile_context>
chip_gen: v7x
topology: tpu7x:2x2x1
jax: 0.10.0
libtpu: 0.0.40
codegen_flags: <defaults>
</compile_context>

<pallas_src>
import functools

import jax
import jax.numpy as jnp
from jax.experimental import pallas as pl
from jax.experimental.pallas import tpu as pltpu

LANE = 128   # lane width for N (hidden / output) dims
SUB_B = 16   # bf16 sublane multiple for the batch tile
FEAT = 16    # rounding for the small input-feature (weight K) dims


def _round_up(x, m):
    return ((x + m - 1) // m) * m


def _cdiv(a, b):
    return -(-a // b)


# ----------------------------------------------------------------------------
# Kernel
# ----------------------------------------------------------------------------
def env_model_kernel(state_ref, action_ref,
                     w1_ref, b1_ref,
                     w2h_ref, w2a_ref, b2_ref,
                     w3_ref, b3_ref,
                     w4_ref, b4_ref,
                     out_ref):
    # Inputs arrive already in the MXU compute dtype (cast in the wrapper).
    s = state_ref[...]
    a = action_ref[...]

    # x = relu(state @ W1 + b1)            (bf16 in, f32 accumulate, f32 elementwise)
    x = jnp.dot(s, w1_ref[...], preferred_element_type=jnp.float32)
    x = jnp.maximum(x + b1_ref[...], 0.0)

    # h = relu(concat(x, action) @ W2 + b2) == relu(x @ W2_h + action @ W2_a + b2)
    h = jnp.dot(x.astype(w2h_ref.dtype), w2h_ref[...],
                preferred_element_type=jnp.float32)
    h = h + jnp.dot(a, w2a_ref[...], preferred_element_type=jnp.float32)
    h = jnp.maximum(h + b2_ref[...], 0.0)

    # h = relu(h @ W3 + b3)
    h = jnp.dot(h.astype(w3_ref.dtype), w3_ref[...],
                preferred_element_type=jnp.float32)
    h = jnp.maximum(h + b3_ref[...], 0.0)

    # out = h @ W4 + b4
    o = jnp.dot(h.astype(w4_ref.dtype), w4_ref[...],
                preferred_element_type=jnp.float32)
    out_ref[...] = (o + b4_ref[...]).astype(out_ref.dtype)


# ----------------------------------------------------------------------------
# Tiling / wrapper
# ----------------------------------------------------------------------------
def _choose_batch_tile(B, block_b, min_split_rows=256):
    """Pick (bb, Bp, n_tiles): bb multiple of 16, small batch-padding waste,
    and >=2 grid steps (v7x megacore) whenever each tile can stay >= min_split_rows."""
    B16 = _round_up(max(B, 1), SUB_B)
    bb_cap = _round_up(block_b, SUB_B)
    n = max(1, _cdiv(B16, bb_cap))
    if n == 1 and B16 >= 2 * min_split_rows:
        n = 2
    bb = _round_up(_cdiv(B16, n), SUB_B)
    n = _cdiv(B16, bb)
    return bb, n * bb, n


@functools.partial(jax.jit, static_argnames=("output_dim", "block_b", "out_dtype"))
def env_model_forward(state, action, pparams, output_dim, *,
                      block_b=512, out_dtype=jnp.float32):
    """state: [B, input_dim] f32, action: [B, action_dim] f32.
    pparams: padded params from prepare_params. Returns [B, output_dim] out_dtype."""
    B = state.shape[0]
    cdt = pparams["w1"].dtype          # MXU compute dtype (bf16 by default)
    in_p = pparams["w1"].shape[0]      # K of layer 1 (input_dim rounded to 16)
    act_p = pparams["w2a"].shape[0]    # K of the action half (rounded to 16)
    hid_p = pparams["w1"].shape[1]     # hidden, 128-padded
    out_p = pparams["w4"].shape[1]     # output, 128-padded

    bb, Bp, n_tiles = _choose_batch_tile(B, block_b)

    # Minimal batch pad + tiny feature pad, fused with the bf16 cast: no
    # 8x-inflated 128-lane copy of the inputs is materialized in HBM, and
    # per-step input DMA is halved vs streaming f32.
    state_p = jnp.pad(state, ((0, Bp - B), (0, in_p - state.shape[1]))).astype(cdt)
    action_p = jnp.pad(action, ((0, Bp - B), (0, act_p - action.shape[1]))).astype(cdt)

    args = (state_p, action_p,
            pparams["w1"], pparams["b1"],
            pparams["w2h"], pparams["w2a"], pparams["b2"],
            pparams["w3"], pparams["b3"],
            pparams["w4"], pparams["b4"])

    stream = lambda cols: pl.BlockSpec((bb, cols), lambda i: (i, 0))
    resident = lambda a: pl.BlockSpec(a.shape, lambda i: (0, 0))   # fetched once

    in_specs = [
        stream(in_p), stream(act_p),
        resident(pparams["w1"]), resident(pparams["b1"]),
        resident(pparams["w2h"]), resident(pparams["w2a"]), resident(pparams["b2"]),
        resident(pparams["w3"]), resident(pparams["b3"]),
        resident(pparams["w4"]), resident(pparams["b4"]),
    ]

    # --- cost estimate (helps XLA scheduling around the custom call) ---------
    flops = 2 * Bp * (in_p * hid_p + act_p * hid_p + 2 * hid_p * hid_p
                      + hid_p * out_p)
    param_bytes = sum(int(v.size) * v.dtype.itemsize for v in pparams.values())
    out_itemsize = jnp.dtype(out_dtype).itemsize
    bytes_accessed = int(
        int(state_p.size) * state_p.dtype.itemsize
        + int(action_p.size) * action_p.dtype.itemsize
        + param_bytes
        + Bp * out_p * out_itemsize)

    # --- explicit VMEM budget: residents (x2 default buffering) + pipelined
    #     input/output tiles + f32 activation headroom --------------------------
    vmem_bytes = int(
        2 * param_bytes
        + 3 * bb * (in_p + act_p) * jnp.dtype(cdt).itemsize
        + 3 * bb * out_p * out_itemsize
        + 6 * bb * hid_p * 4
        + (4 << 20))
    vmem_bytes = min(vmem_bytes, 64 * 1024 * 1024)   # stay within v7x physical VMEM

    out_padded = pl.pallas_call(
        env_model_kernel,
        out_shape=jax.ShapeDtypeStruct((Bp, out_p), out_dtype),
        grid=(n_tiles,),
        in_specs=in_specs,
        out_specs=pl.BlockSpec((bb, out_p), lambda i: (i, 0)),
        compiler_params=pltpu.CompilerParams(
            dimension_semantics=("parallel",),
            vmem_limit_bytes=vmem_bytes,
        ),
        cost_estimate=pl.CostEstimate(
            flops=int(flops), transcendentals=0, bytes_accessed=bytes_accessed),
    )(*args)

    return out_padded[:B, :output_dim]


# ----------------------------------------------------------------------------
# Parameters
# ----------------------------------------------------------------------------
def init_params(key, input_dim, action_dim, hidden_dim, output_dim):
    """Unpadded f32 params, stored [in, out] (transposed vs torch.nn.Linear).
    linear_hidden's weight [hidden+action, hidden] is split into
    w2h [hidden, hidden] (acting on x) and w2a [action, hidden] (acting on action)."""
    ks = jax.random.split(key, 8)
    s = 0.1
    return {
        "w1":  s * jax.random.normal(ks[0], (input_dim, hidden_dim), jnp.float32),
        "b1":  s * jax.random.normal(ks[1], (1, hidden_dim), jnp.float32),
        "w2h": s * jax.random.normal(ks[2], (hidden_dim, hidden_dim), jnp.float32),
        "w2a": s * jax.random.normal(ks[3], (action_dim, hidden_dim), jnp.float32),
        "b2":  s * jax.random.normal(ks[4], (1, hidden_dim), jnp.float32),
        "w3":  s * jax.random.normal(ks[5], (hidden_dim, hidden_dim), jnp.float32),
        "b3":  jnp.zeros((1, hidden_dim), jnp.float32),
        "w4":  s * jax.random.normal(ks[6], (hidden_dim, output_dim), jnp.float32),
        "b4":  s * jax.random.normal(ks[7], (1, output_dim), jnp.float32),
    }


def prepare_params(params, compute_dtype=jnp.bfloat16, lane=LANE,
                   keep_final_f32=False):
    """Pad N (lane) dims of hidden/output to `lane` (128; pass 256 on v6e/v7x if
    the true dims are wide and the model becomes compute-bound).  K dims that
    contract against the *raw inputs* (input_dim, action_dim) are only rounded
    to 16 so no 8x lane-inflated input copy is ever needed.  Hidden-side K dims
    must equal the padded hidden width.  Weights are cast to the MXU compute
    dtype; biases stay f32.  keep_final_f32=True keeps the last layer in f32."""
    in_dim, hid = params["w1"].shape
    act_dim = params["w2a"].shape[0]
    out_dim = params["w4"].shape[1]
    in_p, act_p = _round_up(in_dim, FEAT), _round_up(act_dim, FEAT)
    hid_p, out_p = _round_up(hid, lane), _round_up(out_dim, lane)

    def pad_w(w, rp, cp, dt):
        r, c = w.shape
        return jnp.pad(w, ((0, rp - r), (0, cp - c))).astype(dt)

    def pad_b(b, cp):
        b = b.reshape(1, -1)
        return jnp.pad(b, ((0, 0), (0, cp - b.shape[1]))).astype(jnp.float32)

    final_dt = jnp.float32 if keep_final_f32 else compute_dtype
    return {
        "w1":  pad_w(params["w1"], in_p, hid_p, compute_dtype),
        "b1":  pad_b(params["b1"], hid_p),
        "w2h": pad_w(params["w2h"], hid_p, hid_p, compute_dtype),
        "w2a": pad_w(params["w2a"], act_p, hid_p, compute_dtype),
        "b2":  pad_b(params["b2"], hid_p),
        "w3":  pad_w(params["w3"], hid_p, hid_p, compute_dtype),
        "b3":  pad_b(params["b3"], hid_p),
        "w4":  pad_w(params["w4"], hid_p, out_p, final_dt),
        "b4":  pad_b(params["b4"], out_p),
    }


# ----------------------------------------------------------------------------
# Pure-JAX references
# ----------------------------------------------------------------------------
def env_model_ref(state, action, p):
    # Mirrors the PyTorch forward exactly (f32, with the concat).
    x = jax.nn.relu(state @ p["w1"] + p["b1"])
    xa = jnp.concatenate([x, action], axis=1)
    w2 = jnp.concatenate([p["w2h"], p["w2a"]], axis=0)
    h = jax.nn.relu(xa @ w2 + p["b2"])
    h = jax.nn.relu(h @ p["w3"] + p["b3"])
    return h @ p["w4"] + p["b4"]


def env_model_ref_mixed(state, action, p, cdt=jnp.bfloat16):
    # Mirrors the kernel's numerics: bf16 matmul operands, f32 accumulate/elementwise.
    dot = lambda a, w: jnp.dot(a.astype(cdt), w.astype(cdt),
                               preferred_element_type=jnp.float32)
    x = jax.nn.relu(dot(state, p["w1"]) + p["b1"])
    h = jax.nn.relu(dot(x, p["w2h"]) + dot(action, p["w2a"]) + p["b2"])
    h = jax.nn.relu(dot(h, p["w3"]) + p["b3"])
    return dot(h, p["w4"]) + p["b4"]


# ----------------------------------------------------------------------------
if __name__ == "__main__":
    B, input_dim, action_dim, hidden_dim, output_dim = 8, 16, 4, 32, 16

    key = jax.random.PRNGKey(0)
    k_state, k_action, k_params = jax.random.split(key, 3)

    state = jax.random.normal(k_state, (B, input_dim), jnp.float32)
    action = jax.random.normal(k_action, (B, action_dim), jnp.float32)
    params = init_params(k_params, input_dim, action_dim, hidden_dim, output_dim)
    pparams = prepare_params(params, compute_dtype=jnp.bfloat16)

    out = env_model_forward(state, action, pparams, output_dim)
    out = jax.block_until_ready(out)

    assert out.shape == (B, output_dim)

    # Tight check against a reference with identical (bf16-in / f32-acc) numerics.
    ref_mixed = env_model_ref_mixed(state, action, params)
    assert jnp.allclose(out, ref_mixed, atol=1e-3, rtol=1e-3)

    # Loose check against the exact f32 PyTorch-equivalent forward.
    ref_f32 = env_model_ref(state, action, params)
    assert jnp.allclose(out, ref_f32, atol=3e-2, rtol=3e-2)

    print("KERNEL_OK")
</pallas_src>

<mosaic_0001>
module attributes {stable_mosaic.version = 11 : i64} {
  func.func @env_model_kernel(%arg0: i32, %arg1: memref<16x16xbf16, #tpu.memory_space<vmem>>, %arg2: memref<16x16xbf16, #tpu.memory_space<vmem>>, %arg3: memref<16x128xbf16, #tpu.memory_space<vmem>>, %arg4: memref<1x128xf32, #tpu.memory_space<vmem>>, %arg5: memref<128x128xbf16, #tpu.memory_space<vmem>>, %arg6: memref<16x128xbf16, #tpu.memory_space<vmem>>, %arg7: memref<1x128xf32, #tpu.memory_space<vmem>>, %arg8: memref<128x128xbf16, #tpu.memory_space<vmem>>, %arg9: memref<1x128xf32, #tpu.memory_space<vmem>>, %arg10: memref<128x128xbf16, #tpu.memory_space<vmem>>, %arg11: memref<1x128xf32, #tpu.memory_space<vmem>>, %arg12: memref<16x128xf32, #tpu.memory_space<vmem>>) attributes {dimension_semantics = [#tpu.dimension_semantics<parallel>], iteration_bounds = array<i64: 1>, scalar_prefetch = 0 : i64, scratch_operands = 0 : i64, tpu.core_type = #tpu.core_type<tc>, window_params = [{transform_indices = @transform_0, window_bounds = array<i64: 16, 16>}, {transform_indices = @transform_1, window_bounds = array<i64: 16, 16>}, {pipeline_mode = #tpu.pipeline_mode<synchronous>, transform_indices = @transform_2, window_bounds = array<i64: 16, 128>}, {pipeline_mode = #tpu.pipeline_mode<synchronous>, transform_indices = @transform_3, window_bounds = array<i64: 1, 128>}, {pipeline_mode = #tpu.pipeline_mode<synchronous>, transform_indices = @transform_4, window_bounds = array<i64: 128, 128>}, {pipeline_mode = #tpu.pipeline_mode<synchronous>, transform_indices = @transform_5, window_bounds = array<i64: 16, 128>}, {pipeline_mode = #tpu.pipeline_mode<synchronous>, transform_indices = @transform_6, window_bounds = array<i64: 1, 128>}, {pipeline_mode = #tpu.pipeline_mode<synchronous>, transform_indices = @transform_7, window_bounds = array<i64: 128, 128>}, {pipeline_mode = #tpu.pipeline_mode<synchronous>, transform_indices = @transform_8, window_bounds = array<i64: 1, 128>}, {pipeline_mode = #tpu.pipeline_mode<synchronous>, transform_indices = @transform_9, window_bounds = array<i64: 128, 128>}, {pipeline_mode = #tpu.pipeline_mode<synchronous>, transform_indices = @transform_10, window_bounds = array<i64: 1, 128>}, {transform_indices = @transform_11, window_bounds = array<i64: 16, 128>}]} {
    %c0 = arith.constant 0 : index
    %c0_0 = arith.constant 0 : index
    %0 = vector.load %arg1[%c0, %c0_0] : memref<16x16xbf16, #tpu.memory_space<vmem>>, vector<16x16xbf16>
    %c0_1 = arith.constant 0 : index
    %c0_2 = arith.constant 0 : index
    %1 = vector.load %arg2[%c0_1, %c0_2] : memref<16x16xbf16, #tpu.memory_space<vmem>>, vector<16x16xbf16>
    %c0_3 = arith.constant 0 : index
    %c0_4 = arith.constant 0 : index
    %2 = vector.load %arg3[%c0_3, %c0_4] : memref<16x128xbf16, #tpu.memory_space<vmem>>, vector<16x128xbf16>
    %cst = arith.constant dense<0.000000e+00> : vector<16x128xf32>
    %3 = tpu.matmul %0, %2, %cst {dimension_numbers = #tpu.dot_dimension_numbers<[1], [0], [0], [1], [0, 0, 1, 1], [], []>} : vector<16x16xbf16>, vector<16x128xbf16>, vector<16x128xf32> -> vector<16x128xf32>
    %c0_5 = arith.constant 0 : index
    %c0_6 = arith.constant 0 : index
    %4 = vector.load %arg4[%c0_5, %c0_6] : memref<1x128xf32, #tpu.memory_space<vmem>>, vector<1x128xf32>
    %5 = vector.broadcast %4 : vector<1x128xf32> to vector<16x128xf32>
    %6 = arith.addf %3, %5 : vector<16x128xf32>
    %cst_7 = arith.constant 0.000000e+00 : f32
    %7 = vector.broadcast %cst_7 : f32 to vector<16x128xf32>
    %8 = arith.maximumf %6, %7 : vector<16x128xf32>
    %9 = arith.truncf %8 : vector<16x128xf32> to vector<16x128xbf16>
    %c0_8 = arith.constant 0 : index
    %c0_9 = arith.constant 0 : index
    %10 = vector.load %arg5[%c0_8, %c0_9] : memref<128x128xbf16, #tpu.memory_space<vmem>>, vector<128x128xbf16>
    %cst_10 = arith.constant dense<0.000000e+00> : vector<16x128xf32>
    %11 = tpu.matmul %9, %10, %cst_10 {dimension_numbers = #tpu.dot_dimension_numbers<[1], [0], [0], [1], [0, 0, 1, 1], [], []>} : vector<16x128xbf16>, vector<128x128xbf16>, vector<16x128xf32> -> vector<16x128xf32>
    %c0_11 = arith.constant 0 : index
    %c0_12 = arith.constant 0 : index
    %12 = vector.load %arg6[%c0_11, %c0_12] : memref<16x128xbf16, #tpu.memory_space<vmem>>, vector<16x128xbf16>
    %cst_13 = arith.constant dense<0.000000e+00> : vector<16x128xf32>
    %13 = tpu.matmul %1, %12, %cst_13 {dimension_numbers = #tpu.dot_dimension_numbers<[1], [0], [0], [1], [0, 0, 1, 1], [], []>} : vector<16x16xbf16>, vector<16x128xbf16>, vector<16x128xf32> -> vector<16x128xf32>
    %14 = arith.addf %11, %13 : vector<16x128xf32>
    %c0_14 = arith.constant 0 : index
    %c0_15 = arith.constant 0 : index
    %15 = vector.load %arg7[%c0_14, %c0_15] : memref<1x128xf32, #tpu.memory_space<vmem>>, vector<1x128xf32>
    %16 = vector.broadcast %15 : vector<1x128xf32> to vector<16x128xf32>
    %17 = arith.addf %14, %16 : vector<16x128xf32>
    %cst_16 = arith.constant 0.000000e+00 : f32
    %18 = vector.broadcast %cst_16 : f32 to vector<16x128xf32>
    %19 = arith.maximumf %17, %18 : vector<16x128xf32>
    %20 = arith.truncf %19 : vector<16x128xf32> to vector<16x128xbf16>
    %c0_17 = arith.constant 0 : index
    %c0_18 = arith.constant 0 : index
    %21 = vector.load %arg8[%c0_17, %c0_18] : memref<128x128xbf16, #tpu.memory_space<vmem>>, vector<128x128xbf16>
    %cst_19 = arith.constant dense<0.000000e+00> : vector<16x128xf32>
    %22 = tpu.matmul %20, %21, %cst_19 {dimension_numbers = #tpu.dot_dimension_numbers<[1], [0], [0], [1], [0, 0, 1, 1], [], []>} : vector<16x128xbf16>, vector<128x128xbf16>, vector<16x128xf32> -> vector<16x128xf32>
    %c0_20 = arith.constant 0 : index
    %c0_21 = arith.constant 0 : index
    %23 = vector.load %arg9[%c0_20, %c0_21] : memref<1x128xf32, #tpu.memory_space<vmem>>, vector<1x128xf32>
    %24 = vector.broadcast %23 : vector<1x128xf32> to vector<16x128xf32>
    %25 = arith.addf %22, %24 : vector<16x128xf32>
    %cst_22 = arith.constant 0.000000e+00 : f32
    %26 = vector.broadcast %cst_22 : f32 to vector<16x128xf32>
    %27 = arith.maximumf %25, %26 : vector<16x128xf32>
    %28 = arith.truncf %27 : vector<16x128xf32> to vector<16x128xbf16>
    %c0_23 = arith.constant 0 : index
    %c0_24 = arith.constant 0 : index
    %29 = vector.load %arg10[%c0_23, %c0_24] : memref<128x128xbf16, #tpu.memory_space<vmem>>, vector<128x128xbf16>
    %cst_25 = arith.constant dense<0.000000e+00> : vector<16x128xf32>
    %30 = tpu.matmul %28, %29, %cst_25 {dimension_numbers = #tpu.dot_dimension_numbers<[1], [0], [0], [1], [0, 0, 1, 1], [], []>} : vector<16x128xbf16>, vector<128x128xbf16>, vector<16x128xf32> -> vector<16x128xf32>
    %c0_26 = arith.constant 0 : index
    %c0_27 = arith.constant 0 : index
    %31 = vector.load %arg11[%c0_26, %c0_27] : memref<1x128xf32, #tpu.memory_space<vmem>>, vector<1x128xf32>
    %32 = vector.broadcast %31 : vector<1x128xf32> to vector<16x128xf32>
    %33 = arith.addf %30, %32 : vector<16x128xf32>
    %c0_28 = arith.constant 0 : index
    %c0_29 = arith.constant 0 : index
    %34 = vector.load %arg12[%c0_28, %c0_29] : memref<16x128xf32, #tpu.memory_space<vmem>>, vector<16x128xf32>
    tpu.vector_store %arg12[%c0_28, %c0_29], %33 {strides = array<i32>} : memref<16x128xf32, #tpu.memory_space<vmem>>, vector<16x128xf32>,
    return
  }
  func.func @transform_0(%arg0: i32) -> (i32, i32) {
    %c0_i32 = arith.constant 0 : i32
    %c0_i32_0 = arith.constant 0 : i32
    return %arg0, %c0_i32 : i32, i32
  }
  func.func @transform_1(%arg0: i32) -> (i32, i32) {
    %c0_i32 = arith.constant 0 : i32
    %c0_i32_0 = arith.constant 0 : i32
    return %arg0, %c0_i32 : i32, i32
  }
  func.func @transform_2(%arg0: i32) -> (i32, i32) {
    %c0_i32 = arith.constant 0 : i32
    %c0_i32_0 = arith.constant 0 : i32
    %c0_i32_1 = arith.constant 0 : i32
    return %c0_i32, %c0_i32_0 : i32, i32
  }
  func.func @transform_3(%arg0: i32) -> (i32, i32) {
    %c0_i32 = arith.constant 0 : i32
    %c0_i32_0 = arith.constant 0 : i32
    %c0_i32_1 = arith.constant 0 : i32
    return %c0_i32, %c0_i32_0 : i32, i32
  }
  func.func @transform_4(%arg0: i32) -> (i32, i32) {
    %c0_i32 = arith.constant 0 : i32
    %c0_i32_0 = arith.constant 0 : i32
    %c0_i32_1 = arith.constant 0 : i32
    return %c0_i32, %c0_i32_0 : i32, i32
  }
  func.func @transform_5(%arg0: i32) -> (i32, i32) {
    %c0_i32 = arith.constant 0 : i32
    %c0_i32_0 = arith.constant 0 : i32
    %c0_i32_1 = arith.constant 0 : i32
    return %c0_i32, %c0_i32_0 : i32, i32
  }
  func.func @transform_6(%arg0: i32) -> (i32, i32) {
    %c0_i32 = arith.constant 0 : i32
    %c0_i32_0 = arith.constant 0 : i32
    %c0_i32_1 = arith.constant 0 : i32
    return %c0_i32, %c0_i32_0 : i32, i32
  }
  func.func @transform_7(%arg0: i32) -> (i32, i32) {
    %c0_i32 = arith.constant 0 : i32
    %c0_i32_0 = arith.constant 0 : i32
    %c0_i32_1 = arith.constant 0 : i32
    return %c0_i32, %c0_i32_0 : i32, i32
  }
  func.func @transform_8(%arg0: i32) -> (i32, i32) {
    %c0_i32 = arith.constant 0 : i32
    %c0_i32_0 = arith.constant 0 : i32
    %c0_i32_1 = arith.constant 0 : i32
    return %c0_i32, %c0_i32_0 : i32, i32
  }
  func.func @transform_9(%arg0: i32) -> (i32, i32) {
    %c0_i32 = arith.constant 0 : i32
    %c0_i32_0 = arith.constant 0 : i32
    %c0_i32_1 = arith.constant 0 : i32
    return %c0_i32, %c0_i32_0 : i32, i32
  }
  func.func @transform_10(%arg0: i32) -> (i32, i32) {
    %c0_i32 = arith.constant 0 : i32
    %c0_i32_0 = arith.constant 0 : i32
    %c0_i32_1 = arith.constant 0 : i32
    return %c0_i32, %c0_i32_0 : i32, i32
  }
  func.func @transform_11(%arg0: i32) -> (i32, i32) {
    %c0_i32 = arith.constant 0 : i32
    %c0_i32_0 = arith.constant 0 : i32
    return %arg0, %c0_i32 : i32, i32
  }
}

</mosaic_0001>

<llo_original>
// kernel: env_model_forward.1
$region0: #{env_model_forward.1}
  #allocation0 [shape = 'u32[]', space=smem, size = 0x4, offset = 0x4, fixed_abs, tag = 'smem constant byte address 0x4 - core index']
  #allocation1 [shape = 'u32[144,128]{1,0:T(1,128)}', space=vmem, size = 0x12000, scoped, tag = 'internal scratch']
  %s0 = inlined_call_operand.vmem [shape: bf16[16,16], index: 0, kind: input, shape index: {}]
  %s1 = inlined_call_operand.vmem [shape: bf16[16,16], index: 1, kind: input, shape index: {}]
  %s2 = inlined_call_operand.vmem [shape: bf16[16,128], index: 2, kind: input, shape index: {}]
  %s3 = inlined_call_operand.hbm [shape: f32[1,128], index: 3, kind: input, shape index: {}]
  %s4 = inlined_call_operand.vmem [shape: bf16[128,128], index: 4, kind: input, shape index: {}]
  %s5 = inlined_call_operand.vmem [shape: bf16[16,128], index: 5, kind: input, shape index: {}]
  %s6 = inlined_call_operand.hbm [shape: f32[1,128], index: 6, kind: input, shape index: {}]
  %s7 = inlined_call_operand.hbm [shape: bf16[128,128], index: 7, kind: input, shape index: {}]
  %s8 = inlined_call_operand.hbm [shape: f32[1,128], index: 8, kind: input, shape index: {}]
  %s9 = inlined_call_operand.hbm [shape: bf16[128,128], index: 9, kind: input, shape index: {}]
  %s10 = inlined_call_operand.hbm [shape: f32[1,128], index: 10, kind: input, shape index: {}]
  %s11 = inlined_call_operand.vmem [shape: f32[16,128], index: 11, kind: output, shape index: {}]
  %s12 = sld [smem:[#allocation0]]
  $region78: #{env_model_forward.1} parent=0
    _
  %s14 = ssub.s32 1, %s12
  %s15 = scalar_select 0, %s14, %s12
  $region1: #{env_model_forward.1} parent=0
    #allocation2 [shape = 'u8[512]{0}', space=vmem, size = 0x400, scoped, tag = 'input window, operand 3, single buffered']
    #allocation3 [shape = 's32[1]{0}', space=sflag, size = 0x4, scoped, tag = 'scoped memory for env_model_forward.1']
    #allocation4 [shape = 'u8[512]{0}', space=vmem, size = 0x400, scoped, tag = 'input window, operand 6, single buffered']
    #allocation5 [shape = 's32[1]{0}', space=sflag, size = 0x4, scoped, tag = 'scoped memory for env_model_forward.1']
    #allocation6 [shape = 'u8[32768]{0}', space=vmem, size = 0x8000, scoped, tag = 'input window, operand 7, single buffered']
    #allocation7 [shape = 'u8[512]{0}', space=vmem, size = 0x400, scoped, tag = 'input window, operand 8, single buffered']
    #allocation8 [shape = 's32[1]{0}', space=sflag, size = 0x4, scoped, tag = 'scoped memory for env_model_forward.1']
    #allocation9 [shape = 'u8[32768]{0}', space=vmem, size = 0x8000, scoped, tag = 'input window, operand 9, single buffered']
    #allocation10 [shape = 'u8[512]{0}', space=vmem, size = 0x400, scoped, tag = 'input window, operand 10, single buffered']
    #allocation11 [shape = 's32[1]{0}', space=sflag, size = 0x4, scoped, tag = 'scoped memory for env_model_forward.1']
    %16 = vsyncpa [#allocation3], 0
    %17 = vsyncpa [#allocation5], 0
    %18 = vsyncpa [#allocation8], 0
    %19 = vsyncpa [#allocation11], 0
    // Predicated region
    $region2: #{env_model_forward.1} parent=1 // pred_check
      _
    $region3: #{env_model_forward.1} parent=1 // pred_check_branch
      %21 = sbr.rel (0) target = $region5
    $region4: #{env_model_forward.1} parent=1 // pred_region
      _
    $region5: #{env_model_forward.1} parent=1 // pred_fallthru
      _
    // Predicated region
    $region6: #{env_model_forward.1} parent=1 // pred_check
      _
    $region7: #{env_model_forward.1} parent=1 // pred_check_branch
      %23 = sbr.rel (0) target = $region9
    $region8: #{env_model_forward.1} parent=1 // pred_region
      _
    $region9: #{env_model_forward.1} parent=1 // pred_fallthru
      _
    // Predicated region
    $region10: #{env_model_forward.1} parent=1 // pred_check
      _
    $region11: #{env_model_forward.1} parent=1 // pred_check_branch
      %25 = sbr.rel (0) target = $region13
    $region12: #{env_model_forward.1} parent=1 // pred_region
      _
    $region13: #{env_model_forward.1} parent=1 // pred_fallthru
      _
    // Predicated region
    $region14: #{env_model_forward.1} parent=1 // pred_check
      _
    $region15: #{env_model_forward.1} parent=1 // pred_check_branch
      %27 = sbr.rel (0) target = $region17
    $region16: #{env_model_forward.1} parent=1 // pred_region
      %s29 = ssub.s32 16, 16
      %30 = vsyncadd [#allocation3], %s29
      %s32 = sshll.u32 [#allocation2], 4
      %s33 = int_to_ptr.vmem [resolvable:$true] %s32
      %35 = dma.hbm_to_vmem [thread:$0]  %s3, 16, %s33, [#allocation3]
    $region17: #{env_model_forward.1} parent=1 // pred_fallthru
      _
    // Predicated region
    $region18: #{env_model_forward.1} parent=1 // pred_check
      _
    $region19: #{env_model_forward.1} parent=1 // pred_check_branch
      %37 = sbr.rel (0) target = $region21
    $region20: #{env_model_forward.1} parent=1 // pred_region
      _
    $region21: #{env_model_forward.1} parent=1 // pred_fallthru
      _
    // Predicated region
    $region22: #{env_model_forward.1} parent=1 // pred_check
      _
    $region23: #{env_model_forward.1} parent=1 // pred_check_branch
      %39 = sbr.rel (0) target = $region25
    $region24: #{env_model_forward.1} parent=1 // pred_region
      _
    $region25: #{env_model_forward.1} parent=1 // pred_fallthru
      _
    // Predicated region
    $region26: #{env_model_forward.1} parent=1 // pred_check
      _
    $region27: #{env_model_forward.1} parent=1 // pred_check_branch
      %41 = sbr.rel (0) target = $region29
    $region28: #{env_model_forward.1} parent=1 // pred_region
      %s43 = ssub.s32 16, 16
      %44 = vsyncadd [#allocation5], %s43
      %s46 = sshll.u32 [#allocation4], 4
      %s47 = int_to_ptr.vmem [resolvable:$true] %s46
      %49 = dma.hbm_to_vmem [thread:$0]  %s6, 16, %s47, [#allocation5]
    $region29: #{env_model_forward.1} parent=1 // pred_fallthru
      _
    // Predicated region
    $region30: #{env_model_forward.1} parent=1 // pred_check
      _
    $region31: #{env_model_forward.1} parent=1 // pred_check_branch
      %51 = sbr.rel (0) target = $region33
    $region32: #{env_model_forward.1} parent=1 // pred_region
      %s53 = ssub.s32 1024, 1024
      %54 = vsyncadd [#allocation5], %s53
      %s55 = sshll.u32 [#allocation6], 4
      %s56 = int_to_ptr.vmem [resolvable:$true] %s55
      %61 = dma.hbm_to_vmem [thread:$0]  %s7, 1024, %s56, [#allocation5], 64, 64, 4
    $region33: #{env_model_forward.1} parent=1 // pred_fallthru
      _
    // Predicated region
    $region34: #{env_model_forward.1} parent=1 // pred_check
      _
    $region35: #{env_model_forward.1} parent=1 // pred_check_branch
      %63 = sbr.rel (0) target = $region37
    $region36: #{env_model_forward.1} parent=1 // pred_region
      %s65 = ssub.s32 16, 16
      %66 = vsyncadd [#allocation8], %s65
      %s68 = sshll.u32 [#allocation7], 4
      %s69 = int_to_ptr.vmem [resolvable:$true] %s68
      %71 = dma.hbm_to_vmem [thread:$0]  %s8, 16, %s69, [#allocation8]
    $region37: #{env_model_forward.1} parent=1 // pred_fallthru
      _
    // Predicated region
    $region38: #{env_model_forward.1} parent=1 // pred_check
      _
    $region39: #{env_model_forward.1} parent=1 // pred_check_branch
      %73 = sbr.rel (0) target = $region41
    $region40: #{env_model_forward.1} parent=1 // pred_region
      %s75 = ssub.s32 1024, 1024
      %76 = vsyncadd [#allocation8], %s75
      %s77 = sshll.u32 [#allocation9], 4
      %s78 = int_to_ptr.vmem [resolvable:$true] %s77
      %83 = dma.hbm_to_vmem [thread:$0]  %s9, 1024, %s78, [#allocation8], 64, 64, 4
    $region41: #{env_model_forward.1} parent=1 // pred_fallthru
      _
    // Predicated region
    $region42: #{env_model_forward.1} parent=1 // pred_check
      _
    $region43: #{env_model_forward.1} parent=1 // pred_check_branch
      %85 = sbr.rel (0) target = $region45
    $region44: #{env_model_forward.1} parent=1 // pred_region
      %s87 = ssub.s32 16, 16
      %88 = vsyncadd [#allocation11], %s87
      %s90 = sshll.u32 [#allocation10], 4
      %s91 = int_to_ptr.vmem [resolvable:$true] %s90
      %93 = dma.hbm_to_vmem [thread:$0]  %s10, 16, %s91, [#allocation11]
    $region45: #{env_model_forward.1} parent=1 // pred_fallthru
      _
    // Predicated region
    $region46: #{env_model_forward.1} parent=1 // pred_check
      _
    $region47: #{env_model_forward.1} parent=1 // pred_check_branch
      %95 = sbr.rel (0) target = $region49
    $region48: #{env_model_forward.1} parent=1 // pred_region
      %96 = dma.done [#allocation3], 16
    $region49: #{env_model_forward.1} parent=1 // pred_fallthru
      _
    // Predicated region
    $region50: #{env_model_forward.1} parent=1 // pred_check
      _
    $region51: #{env_model_forward.1} parent=1 // pred_check_branch
      %98 = sbr.rel (0) target = $region53
    $region52: #{env_model_forward.1} parent=1 // pred_region
      %99 = dma.done [#allocation5], 16
    $region53: #{env_model_forward.1} parent=1 // pred_fallthru
      _
    // Predicated region
    $region54: #{env_model_forward.1} parent=1 // pred_check
      _
    $region55: #{env_model_forward.1} parent=1 // pred_check_branch
      %101 = sbr.rel (0) target = $region57
    $region56: #{env_model_forward.1} parent=1 // pred_region
      %102 = dma.done [#allocation5], 1024
    $region57: #{env_model_forward.1} parent=1 // pred_fallthru
      _
    // Predicated region
    $region58: #{env_model_forward.1} parent=1 // pred_check
      _
    $region59: #{env_model_forward.1} parent=1 // pred_check_branch
      %104 = sbr.rel (0) target = $region61
    $region60: #{env_model_forward.1} parent=1 // pred_region
      %105 = dma.done [#allocation8], 16
    $region61: #{env_model_forward.1} parent=1 // pred_fallthru
      _
    // Predicated region
    $region62: #{env_model_forward.1} parent=1 // pred_check
      _
    $region63: #{env_model_forward.1} parent=1 // pred_check_branch
      %107 = sbr.rel (0) target = $region65
    $region64: #{env_model_forward.1} parent=1 // pred_region
      %108 = dma.done [#allocation8], 1024
    $region65: #{env_model_forward.1} parent=1 // pred_fallthru
      _
    // Predicated region
    $region66: #{env_model_forward.1} parent=1 // pred_check
      _
    $region67: #{env_model_forward.1} parent=1 // pred_check_branch
      %110 = sbr.rel (0) target = $region69
    $region68: #{env_model_forward.1} parent=1 // pred_region
      %111 = dma.done [#allocation11], 16
    $region69: #{env_model_forward.1} parent=1 // pred_fallthru
      _
    %v113 = vld [vmem:[%s0] sm:$0xf]
    %v114 = vld [vmem:[%s0 + $0x4] sm:$0xf]
    %v115 = vld [vmem:[%s1] sm:$0xf]
    %v116 = vld [vmem:[%s1 + $0x4] sm:$0xf]
    %v117 = vld [vmem:[%s2] sm:$0xf]
    %v118 = vld [vmem:[%s2 + $0x4] sm:$0xf]
    %v119 = vld [vmem:[#allocation2] sm:$0x1]
    %v121 = vlaneseq
    %v122 = vshrl.u32 %v121, 7
    %v123 = vsub.s32 0, %v122
    %v124 = vrot.slane %v119, %v123
    %v128 = vunpack.c.l.b16 %v113
    %v129 = vunpack.c.l.b16 %v114
    %v130 = vpack.c.b16 %v129, %v128
    %v133 = vunpack.c.l.b16 %v117
    %v134 = vunpack.c.l.b16 %v118
    %v135 = vpack.c.b16 %v134, %v133
    %vm137 = vcmask 130048
    %v139 = vsel %vm137, %v130, 0
    %141 = vmatprep.subr.bf16.mxu0 0
    %142 = vmatpush1.bf16.msra.mxu0 %v135
    %143 = vmatprep.subr.bf16.mxu0 0
    %144 = vmatpush1.bf16.msra.mxu0 0
    %145 = vmatprep.subr.bf16.mxu0 0
    %146 = vmatpush1.bf16.msra.mxu0 0
    %147 = vmatprep.subr.bf16.mxu0 0
    %148 = vmatpush1.bf16.msra.mxu0 0
    %149 = vmatprep.subr.bf16.mxu0 0
    %150 = vmatpush1.bf16.msra.mxu0 0
    %151 = vmatprep.subr.bf16.mxu0 0
    %152 = vmatpush1.bf16.msra.mxu0 0
    %153 = vmatprep.subr.bf16.mxu0 0
    %154 = vmatpush1.bf16.msra.mxu0 0
    %155 = vmatprep.subr.bf16.mxu0 0
    %156 = vmatpush1.bf16.msra.mxu0 0
    %157 = vmatprep.subr.bf16.mxu0 0
    %158 = vmatpush1.bf16.msra.mxu0 0
    %159 = vmatprep.subr.bf16.mxu0 0
    %160 = vmatpush1.bf16.msra.mxu0 0
    %161 = vmatprep.subr.bf16.mxu0 0
    %162 = vmatpush1.bf16.msra.mxu0 0
    %163 = vmatprep.subr.bf16.mxu0 0
    %164 = vmatpush1.bf16.msra.mxu0 0
    %165 = vmatprep.subr.bf16.mxu0 0
    %166 = vmatpush1.bf16.msra.mxu0 0
    %167 = vmatprep.subr.bf16.mxu0 0
    %168 = vmatpush1.bf16.msra.mxu0 0
    %169 = vmatprep.subr.bf16.mxu0 0
    %170 = vmatpush1.bf16.msra.mxu0 0
    %171 = vmatprep.subr.bf16.mxu0 0
    %172 = vmatpush1.bf16.msra.mxu0 0
    %173 = vmatprep.mubr.bf16.mxu0 0
    %174 = vmatmul.mubr.bf16.gmra.mrb[0].mxu0 %v139
    %v175 = vpop.f32.mrb[0].mxu0
    %v176 = vadd.f32 %v124, %v175
    %v177 = vpop.f32.mrb[0].mxu0
    %v178 = vpop.f32.mrb[0].mxu0
    %v179 = vadd.f32 %v124, %v178
    %v180 = vpop.f32.mrb[0].mxu0
    %181 = vdwg.mxu0
    %v182 = vmax.f32 %v176, 0.0
    %v183 = vmax.f32 %v179, 0.0
    %v184 = vpack.c.bf16 %v183, %v182
    %v185 = vld [vmem:[%s4] sm:$0xf]
    %v186 = vld [vmem:[%s4 + $0x4] sm:$0xf]
    %v187 = vld [vmem:[%s4 + $0x8] sm:$0xf]
    %v188 = vld [vmem:[%s4 + $0xc] sm:$0xf]
    %v189 = vld [vmem:[%s4 + $0x10] sm:$0xf]
    %v190 = vld [vmem:[%s4 + $0x14] sm:$0xf]
    %v191 = vld [vmem:[%s4 + $0x18] sm:$0xf]
    %v192 = vld [vmem:[%s4 + $0x1c] sm:$0xf]
    %v193 = vld [vmem:[%s4 + $0x20] sm:$0xf]
    %v194 = vld [vmem:[%s4 + $0x24] sm:$0xf]
    %v195 = vld [vmem:[%s4 + $0x28] sm:$0xf]
    %v196 = vld [vmem:[%s4 + $0x2c] sm:$0xf]
    %v197 = vld [vmem:[%s4 + $0x30] sm:$0xf]
    %v198 = vld [vmem:[%s4 + $0x34] sm:$0xf]
    %v199 = vld [vmem:[%s4 + $0x38] sm:$0xf]
    %v200 = vld [vmem:[%s4 + $0x3c] sm:$0xf]
    %v201 = vld [vmem:[%s5] sm:$0xf]
    %v202 = vld [vmem:[%s5 + $0x4] sm:$0xf]
    %v205 = vunpack.c.l.b16 %v115
    %v206 = vunpack.c.l.b16 %v116
    %v207 = vpack.c.b16 %v206, %v205
    %v210 = vunpack.c.l.b16 %v201
    %v211 = vunpack.c.l.b16 %v202
    %v212 = vpack.c.b16 %v211, %v210
    %v215 = vsel %vm137, %v207, 0
    %217 = vmatprep.subr.bf16.mxu0 0
    %218 = vmatpush1.bf16.msra.mxu0 %v212
    %219 = vmatprep.subr.bf16.mxu0 0
    %220 = vmatpush1.bf16.msra.mxu0 0
    %221 = vmatprep.subr.bf16.mxu0 0
    %222 = vmatpush1.bf16.msra.mxu0 0
    %223 = vmatprep.subr.bf16.mxu0 0
    %224 = vmatpush1.bf16.msra.mxu0 0
    %225 = vmatprep.subr.bf16.mxu0 0
    %226 = vmatpush1.bf16.msra.mxu0 0
    %227 = vmatprep.subr.bf16.mxu0 0
    %228 = vmatpush1.bf16.msra.mxu0 0
    %229 = vmatprep.subr.bf16.mxu0 0
    %230 = vmatpush1.bf16.msra.mxu0 0
    %231 = vmatprep.subr.bf16.mxu0 0
    %232 = vmatpush1.bf16.msra.mxu0 0
    %233 = vmatprep.subr.bf16.mxu0 0
    %234 = vmatpush1.bf16.msra.mxu0 0
    %235 = vmatprep.subr.bf16.mxu0 0
    %236 = vmatpush1.bf16.msra.mxu0 0
    %237 = vmatprep.subr.bf16.mxu0 0
    %238 = vmatpush1.bf16.msra.mxu0 0
    %239 = vmatprep.subr.bf16.mxu0 0
    %240 = vmatpush1.bf16.msra.mxu0 0
    %241 = vmatprep.subr.bf16.mxu0 0
    %242 = vmatpush1.bf16.msra.mxu0 0
    %243 = vmatprep.subr.bf16.mxu0 0
    %244 = vmatpush1.bf16.msra.mxu0 0
    %245 = vmatprep.subr.bf16.mxu0 0
    %246 = vmatpush1.bf16.msra.mxu0 0
    %247 = vmatprep.subr.bf16.mxu0 0
    %248 = vmatpush1.bf16.msra.mxu0 0
    %249 = vmatprep.mubr.bf16.mxu0 0
    %250 = vmatmul.mubr.bf16.gmra.mrb[0].mxu0 %v215
    %v251 = vpop.f32.mrb[0].mxu0
    %v252 = vadd.f32 0.0, %v251
    %v253 = vpop.f32.mrb[0].mxu0
    %v254 = vpop.f32.mrb[0].mxu0
    %v255 = vadd.f32 0.0, %v254
    %v256 = vpop.f32.mrb[0].mxu0
    %257 = vdwg.mxu0
    %v274 = vunpack.c.l.b16 %v185
    %v275 = vunpack.c.l.b16 %v186
    %v276 = vunpack.c.l.b16 %v187
    %v277 = vunpack.c.l.b16 %v188
    %v278 = vunpack.c.l.b16 %v189
    %v279 = vunpack.c.l.b16 %v190
    %v280 = vunpack.c.l.b16 %v191
    %v281 = vunpack.c.l.b16 %v192
    %v282 = vunpack.c.l.b16 %v193
    %v283 = vunpack.c.l.b16 %v194
    %v284 = vunpack.c.l.b16 %v195
    %v285 = vunpack.c.l.b16 %v196
    %v286 = vunpack.c.l.b16 %v197
    %v287 = vunpack.c.l.b16 %v198
    %v288 = vunpack.c.l.b16 %v199
    %v289 = vunpack.c.l.b16 %v200
    %v290 = vpack.c.b16 %v275, %v274
    %v291 = vpack.c.b16 %v277, %v276
    %v292 = vpack.c.b16 %v279, %v278
    %v293 = vpack.c.b16 %v281, %v280
    %v294 = vpack.c.b16 %v283, %v282
    %v295 = vpack.c.b16 %v285, %v284
    %v296 = vpack.c.b16 %v287, %v286
    %v297 = vpack.c.b16 %v289, %v288
    %306 = vmatprep.subr.bf16.mxu0 0
    %307 = vmatpush1.bf16.msra.mxu0 %v290
    %308 = vmatprep.subr.bf16.mxu0 0
    %309 = vmatpush1.bf16.msra.mxu0 %v291
    %310 = vmatprep.subr.bf16.mxu0 0
    %311 = vmatpush1.bf16.msra.mxu0 %v292
    %312 = vmatprep.subr.bf16.mxu0 0
    %313 = vmatpush1.bf16.msra.mxu0 %v293
    %314 = vmatprep.subr.bf16.mxu0 0
    %315 = vmatpush1.bf16.msra.mxu0 %v294
    %316 = vmatprep.subr.bf16.mxu0 0
    %317 = vmatpush1.bf16.msra.mxu0 %v295
    %318 = vmatprep.subr.bf16.mxu0 0
    %319 = vmatpush1.bf16.msra.mxu0 %v296
    %320 = vmatprep.subr.bf16.mxu0 0
    %321 = vmatpush1.bf16.msra.mxu0 %v297
    %322 = vmatprep.subr.bf16.mxu0 0
    %323 = vmatpush1.bf16.msra.mxu0 0
    %324 = vmatprep.subr.bf16.mxu0 0
    %325 = vmatpush1.bf16.msra.mxu0 0
    %326 = vmatprep.subr.bf16.mxu0 0
    %327 = vmatpush1.bf16.msra.mxu0 0
    %328 = vmatprep.subr.bf16.mxu0 0
    %329 = vmatpush1.bf16.msra.mxu0 0
    %330 = vmatprep.subr.bf16.mxu0 0
    %331 = vmatpush1.bf16.msra.mxu0 0
    %332 = vmatprep.subr.bf16.mxu0 0
    %333 = vmatpush1.bf16.msra.mxu0 0
    %334 = vmatprep.subr.bf16.mxu0 0
    %335 = vmatpush1.bf16.msra.mxu0 0
    %336 = vmatprep.subr.bf16.mxu0 0
    %337 = vmatpush1.bf16.msra.mxu0 0
    %338 = vmatprep.mubr.bf16.mxu0 0
    %339 = vmatmul.mubr.bf16.gmra.mrb[0].mxu0 %v184
    %v340 = vpop.f32.mrb[0].mxu0
    %v341 = vadd.f32 %v252, %v340
    %v342 = vpop.f32.mrb[0].mxu0
    %v343 = vpop.f32.mrb[0].mxu0
    %v344 = vadd.f32 %v255, %v343
    %v345 = vpop.f32.mrb[0].mxu0
    %346 = vdwg.mxu0
    %v347 = vld [vmem:[#allocation4] sm:$0x1]
    %v349 = vlaneseq
    %v350 = vshrl.u32 %v349, 7
    %v351 = vsub.s32 0, %v350
    %v352 = vrot.slane %v347, %v351
    %v354 = vadd.f32 %v341, %v352
    %v355 = vadd.f32 %v344, %v352
    %v356 = vmax.f32 %v354, 0.0
    %v357 = vmax.f32 %v355, 0.0
    %v358 = vpack.c.bf16 %v357, %v356
    %v359 = vld [vmem:[#allocation6] sm:$0xf]
    %v360 = vld [vmem:[#allocation6 + $0x4] sm:$0xf]
    %v361 = vld [vmem:[#allocation6 + $0x8] sm:$0xf]
    %v362 = vld [vmem:[#allocation6 + $0xc] sm:$0xf]
    %v363 = vld [vmem:[#allocation6 + $0x10] sm:$0xf]
    %v364 = vld [vmem:[#allocation6 + $0x14] sm:$0xf]
    %v365 = vld [vmem:[#allocation6 + $0x18] sm:$0xf]
    %v366 = vld [vmem:[#allocation6 + $0x1c] sm:$0xf]
    %v367 = vld [vmem:[#allocation6 + $0x20] sm:$0xf]
    %v368 = vld [vmem:[#allocation6 + $0x24] sm:$0xf]
    %v369 = vld [vmem:[#allocation6 + $0x28] sm:$0xf]
    %v370 = vld [vmem:[#allocation6 + $0x2c] sm:$0xf]
    %v371 = vld [vmem:[#allocation6 + $0x30] sm:$0xf]
    %v372 = vld [vmem:[#allocation6 + $0x34] sm:$0xf]
    %v373 = vld [vmem:[#allocation6 + $0x38] sm:$0xf]
    %v374 = vld [vmem:[#allocation6 + $0x3c] sm:$0xf]
    %v375 = vld [vmem:[#allocation7] sm:$0x1]
    %v377 = vlaneseq
    %v378 = vshrl.u32 %v377, 7
    %v379 = vsub.s32 0, %v378
    %v380 = vrot.slane %v375, %v379
    %v398 = vunpack.c.l.b16 %v359
    %v399 = vunpack.c.l.b16 %v360
    %v400 = vunpack.c.l.b16 %v361
    %v401 = vunpack.c.l.b16 %v362
    %v402 = vunpack.c.l.b16 %v363
    %v403 = vunpack.c.l.b16 %v364
    %v404 = vunpack.c.l.b16 %v365
    %v405 = vunpack.c.l.b16 %v366
    %v406 = vunpack.c.l.b16 %v367
    %v407 = vunpack.c.l.b16 %v368
    %v408 = vunpack.c.l.b16 %v369
    %v409 = vunpack.c.l.b16 %v370
    %v410 = vunpack.c.l.b16 %v371
    %v411 = vunpack.c.l.b16 %v372
    %v412 = vunpack.c.l.b16 %v373
    %v413 = vunpack.c.l.b16 %v374
    %v414 = vpack.c.b16 %v399, %v398
    %v415 = vpack.c.b16 %v401, %v400
    %v416 = vpack.c.b16 %v403, %v402
    %v417 = vpack.c.b16 %v405, %v404
    %v418 = vpack.c.b16 %v407, %v406
    %v419 = vpack.c.b16 %v409, %v408
    %v420 = vpack.c.b16 %v411, %v410
    %v421 = vpack.c.b16 %v413, %v412
    %430 = vmatprep.subr.bf16.mxu0 0
    %431 = vmatpush1.bf16.msra.mxu0 %v414
    %432 = vmatprep.subr.bf16.mxu0 0
    %433 = vmatpush1.bf16.msra.mxu0 %v415
    %434 = vmatprep.subr.bf16.mxu0 0
    %435 = vmatpush1.bf16.msra.mxu0 %v416
    %436 = vmatprep.subr.bf16.mxu0 0
    %437 = vmatpush1.bf16.msra.mxu0 %v417
    %438 = vmatprep.subr.bf16.mxu0 0
    %439 = vmatpush1.bf16.msra.mxu0 %v418
    %440 = vmatprep.subr.bf16.mxu0 0
    %441 = vmatpush1.bf16.msra.mxu0 %v419
    %442 = vmatprep.subr.bf16.mxu0 0
    %443 = vmatpush1.bf16.msra.mxu0 %v420
    %444 = vmatprep.subr.bf16.mxu0 0
    %445 = vmatpush1.bf16.msra.mxu0 %v421
    %446 = vmatprep.subr.bf16.mxu0 0
    %447 = vmatpush1.bf16.msra.mxu0 0
    %448 = vmatprep.subr.bf16.mxu0 0
    %449 = vmatpush1.bf16.msra.mxu0 0
    %450 = vmatprep.subr.bf16.mxu0 0
    %451 = vmatpush1.bf16.msra.mxu0 0
    %452 = vmatprep.subr.bf16.mxu0 0
    %453 = vmatpush1.bf16.msra.mxu0 0
    %454 = vmatprep.subr.bf16.mxu0 0
    %455 = vmatpush1.bf16.msra.mxu0 0
    %456 = vmatprep.subr.bf16.mxu0 0
    %457 = vmatpush1.bf16.msra.mxu0 0
    %458 = vmatprep.subr.bf16.mxu0 0
    %459 = vmatpush1.bf16.msra.mxu0 0
    %460 = vmatprep.subr.bf16.mxu0 0
    %461 = vmatpush1.bf16.msra.mxu0 0
    %462 = vmatprep.mubr.bf16.mxu0 0
    %463 = vmatmul.mubr.bf16.gmra.mrb[0].mxu0 %v358
    %v464 = vpop.f32.mrb[0].mxu0
    %v465 = vadd.f32 %v380, %v464
    %v466 = vpop.f32.mrb[0].mxu0
    %v467 = vpop.f32.mrb[0].mxu0
    %v468 = vadd.f32 %v380, %v467
    %v469 = vpop.f32.mrb[0].mxu0
    %470 = vdwg.mxu0
    %v471 = vmax.f32 %v465, 0.0
    %v472 = vmax.f32 %v468, 0.0
    %v473 = vpack.c.bf16 %v472, %v471
    %v474 = vld [vmem:[#allocation9] sm:$0xf]
    %v475 = vld [vmem:[#allocation9 + $0x4] sm:$0xf]
    %v476 = vld [vmem:[#allocation9 + $0x8] sm:$0xf]
    %v477 = vld [vmem:[#allocation9 + $0xc] sm:$0xf]
    %v478 = vld [vmem:[#allocation9 + $0x10] sm:$0xf]
    %v479 = vld [vmem:[#allocation9 + $0x14] sm:$0xf]
    %v480 = vld [vmem:[#allocation9 + $0x18] sm:$0xf]
    %v481 = vld [vmem:[#allocation9 + $0x1c] sm:$0xf]
    %v482 = vld [vmem:[#allocation9 + $0x20] sm:$0xf]
    %v483 = vld [vmem:[#allocation9 + $0x24] sm:$0xf]
    %v484 = vld [vmem:[#allocation9 + $0x28] sm:$0xf]
    %v485 = vld [vmem:[#allocation9 + $0x2c] sm:$0xf]
    %v486 = vld [vmem:[#allocation9 + $0x30] sm:$0xf]
    %v487 = vld [vmem:[#allocation9 + $0x34] sm:$0xf]
    %v488 = vld [vmem:[#allocation9 + $0x38] sm:$0xf]
    %v489 = vld [vmem:[#allocation9 + $0x3c] sm:$0xf]
    %v490 = vld [vmem:[#allocation10] sm:$0x1]
    %v492 = vlaneseq
    %v493 = vshrl.u32 %v492, 7
    %v494 = vsub.s32 0, %v493
    %v495 = vrot.slane %v490, %v494
    %v513 = vunpack.c.l.b16 %v474
    %v514 = vunpack.c.l.b16 %v475
    %v515 = vunpack.c.l.b16 %v476
    %v516 = vunpack.c.l.b16 %v477
    %v517 = vunpack.c.l.b16 %v478
    %v518 = vunpack.c.l.b16 %v479
    %v519 = vunpack.c.l.b16 %v480
    %v520 = vunpack.c.l.b16 %v481
    %v521 = vunpack.c.l.b16 %v482
    %v522 = vunpack.c.l.b16 %v483
    %v523 = vunpack.c.l.b16 %v484
    %v524 = vunpack.c.l.b16 %v485
    %v525 = vunpack.c.l.b16 %v486
    %v526 = vunpack.c.l.b16 %v487
    %v527 = vunpack.c.l.b16 %v488
    %v528 = vunpack.c.l.b16 %v489
    %v529 = vpack.c.b16 %v514, %v513
    %v530 = vpack.c.b16 %v516, %v515
    %v531 = vpack.c.b16 %v518, %v517
    %v532 = vpack.c.b16 %v520, %v519
    %v533 = vpack.c.b16 %v522, %v521
    %v534 = vpack.c.b16 %v524, %v523
    %v535 = vpack.c.b16 %v526, %v525
    %v536 = vpack.c.b16 %v528, %v527
    %545 = vmatprep.subr.bf16.mxu0 0
    %546 = vmatpush1.bf16.msra.mxu0 %v529
    %547 = vmatprep.subr.bf16.mxu0 0
    %548 = vmatpush1.bf16.msra.mxu0 %v530
    %549 = vmatprep.subr.bf16.mxu0 0
    %550 = vmatpush1.bf16.msra.mxu0 %v531
    %551 = vmatprep.subr.bf16.mxu0 0
    %552 = vmatpush1.bf16.msra.mxu0 %v532
    %553 = vmatprep.subr.bf16.mxu0 0
    %554 = vmatpush1.bf16.msra.mxu0 %v533
    %555 = vmatprep.subr.bf16.mxu0 0
    %556 = vmatpush1.bf16.msra.mxu0 %v534
    %557 = vmatprep.subr.bf16.mxu0 0
    %558 = vmatpush1.bf16.msra.mxu0 %v535
    %559 = vmatprep.subr.bf16.mxu0 0
    %560 = vmatpush1.bf16.msra.mxu0 %v536
    %561 = vmatprep.subr.bf16.mxu0 0
    %562 = vmatpush1.bf16.msra.mxu0 0
    %563 = vmatprep.subr.bf16.mxu0 0
    %564 = vmatpush1.bf16.msra.mxu0 0
    %565 = vmatprep.subr.bf16.mxu0 0
    %566 = vmatpush1.bf16.msra.mxu0 0
    %567 = vmatprep.subr.bf16.mxu0 0
    %568 = vmatpush1.bf16.msra.mxu0 0
    %569 = vmatprep.subr.bf16.mxu0 0
    %570 = vmatpush1.bf16.msra.mxu0 0
    %571 = vmatprep.subr.bf16.mxu0 0
    %572 = vmatpush1.bf16.msra.mxu0 0
    %573 = vmatprep.subr.bf16.mxu0 0
    %574 = vmatpush1.bf16.msra.mxu0 0
    %575 = vmatprep.subr.bf16.mxu0 0
    %576 = vmatpush1.bf16.msra.mxu0 0
    %577 = vmatprep.mubr.bf16.mxu0 0
    %578 = vmatmul.mubr.bf16.gmra.mrb[0].mxu0 %v473
    %v579 = vpop.f32.mrb[0].mxu0
    %v580 = vadd.f32 %v495, %v579
    %v581 = vpop.f32.mrb[0].mxu0
    %v582 = vpop.f32.mrb[0].mxu0
    %v583 = vadd.f32 %v495, %v582
    %v584 = vpop.f32.mrb[0].mxu0
    %585 = vdwg.mxu0
    %586 = vst [vmem:[%s11] sm:$0xff] %v580
    %587 = vst [vmem:[%s11 + $0x8] sm:$0xff] %v583
    // Predicated region
    $region70: #{env_model_forward.1} parent=1 // pred_check
      _
    $region71: #{env_model_forward.1} parent=1 // pred_check_branch
      %589 = sbr.rel (0) target = $region73
    $region72: #{env_model_forward.1} parent=1 // pred_region
      _
    $region73: #{env_model_forward.1} parent=1 // pred_fallthru
      _
    // Predicated region
    $region74: #{env_model_forward.1} parent=1 // pred_check
      _
    $region75: #{env_model_forward.1} parent=1 // pred_check_branch
      %591 = sbr.rel (0) target = $region77
    $region76: #{env_model_forward.1} parent=1 // pred_region
      _
    $region77: #{env_model_forward.1} parent=1 // pred_fallthru
      _
    %592 = vsyncpa [#allocation3], 1
    %593 = vsyncpa [#allocation5], 1
    %594 = vsyncpa [#allocation8], 1
    %595 = vsyncpa [#allocation11], 1

</llo_original>
